<compile_context>
chip_gen: v5e
topology: v5e:2x2
jax: 0.10.0
libtpu: 0.0.40
codegen_flags: <defaults>
</compile_context>

<pallas_src>
import functools

import jax
import jax.numpy as jnp
from jax import lax
from jax.experimental import pallas as pl
from jax.experimental.pallas import tpu as pltpu


def _leaky_relu(x, slope):
    return jnp.where(x >= 0, x, slope * x)


def _pick_tile(n, preferred):
    for t in (preferred, 512, 256, 128):
        if t <= n and n % t == 0:
            return t
    return n


def _block_diag(att, heads, out_ch):
    """[1, H*C] attention vector -> [H, H*C] block-diagonal rows."""
    a = att.reshape(heads, out_ch)
    eye = jnp.eye(heads, dtype=att.dtype)
    return (eye[:, :, None] * a[None, :, :]).reshape(heads, heads * out_ch)


# ----------------------------------------------------------------------------
# Row-tiled linear kernel: y = x @ W (+ b) (+ LeakyReLU), bf16 output.
# Also used (b=None, slope=None) as the once-per-conv head projection.
# ----------------------------------------------------------------------------
def _linear_kernel(*refs, slope, has_bias):
    if has_bias:
        x_ref, w_ref, b_ref, o_ref = refs
    else:
        x_ref, w_ref, o_ref = refs
    y = jnp.dot(x_ref[...].astype(jnp.bfloat16),
                w_ref[...].astype(jnp.bfloat16),
                preferred_element_type=jnp.float32)
    if has_bias:
        y = y + b_ref[...].astype(jnp.float32)
    if slope is not None:
        y = _leaky_relu(y, slope)
    o_ref[...] = y.astype(o_ref.dtype)


def linear(x, w, b=None, slope=None, out_dtype=jnp.bfloat16, block_rows=256):
    n, din = x.shape
    dout = w.shape[1]
    tm = _pick_tile(n, block_rows)
    in_specs = [
        pl.BlockSpec((tm, din), lambda i: (i, 0)),
        pl.BlockSpec((din, dout), lambda i: (0, 0)),
    ]
    args = [x, w]
    if b is not None:
        in_specs.append(pl.BlockSpec((1, dout), lambda i: (0, 0)))
        args.append(b.reshape(1, dout))
    return pl.pallas_call(
        functools.partial(_linear_kernel, slope=slope, has_bias=b is not None),
        out_shape=jax.ShapeDtypeStruct((n, dout), out_dtype),
        grid=(n // tm,),
        in_specs=in_specs,
        out_specs=pl.BlockSpec((tm, dout), lambda i: (i, 0)),
        compiler_params=pltpu.CompilerParams(
            dimension_semantics=("parallel",)),
    )(*args)


# ----------------------------------------------------------------------------
# Fused SuperGATConv ('MX' attention) kernel, streaming (online) softmax.
#   grid = (q_tiles, kv_tiles);  q = "parallel", kv = "arbitrary" (reduction).
#   nblk_ref : [QT, KT] int32 (SMEM, scalar-prefetch) — 1 iff the adjacency
#              block is non-empty; empty blocks skip all compute.
#   xq_ref/xk_ref : [tq/tk, H*C] bf16 PRE-PROJECTED node features.
#   attl/attr     : [H, H*C] bf16 block-diagonal attention vectors.
#   bias          : [1, H*C] f32 conv bias.
#   mask_ref      : [tq, tk] int8, 1 iff edge j -> i (self-loops included).
# Per head h:  alpha_ij = ((x_j.att_l) + (x_i.att_r)) * sigmoid(x_i.x_j)
#              leaky_relu(0.2) -> masked per-target softmax -> sum_j a_ij x_j
#              + bias; outer LeakyReLU(0.01) fused. Output lane-dense [tq,H*C].
# ----------------------------------------------------------------------------
def _supergat_kernel(nblk_ref, xq_ref, xk_ref, attl_ref, attr_ref, bias_ref,
                     mask_ref, o_ref, ar_s, m_s, l_s, acc_s,
                     *, heads, out_ch, att_slope, out_slope):
    q = pl.program_id(0)
    kv = pl.program_id(1)

    @pl.when(kv == 0)
    def _init():
        # -1e30 (not -inf) so a fully-masked kv tile never produces inf - inf.
        m_s[...] = jnp.full_like(m_s, -1e30)
        l_s[...] = jnp.zeros_like(l_s)
        acc_s[...] = jnp.zeros_like(acc_s)
        # Target attention term for all heads at once: [tq, H] (one MXU call).
        ar_s[...] = lax.dot_general(
            xq_ref[...], attr_ref[...], (((1,), (1,)), ((), ())),
            preferred_element_type=jnp.float32)

    @pl.when(nblk_ref[q, kv] > 0)
    def _body():
        xq = xq_ref[...]                        # [tq, H*C] bf16
        xk = xk_ref[...]                        # [tk, H*C] bf16
        mask_b = mask_ref[...] > 0              # [tq, tk] bool
        maskf = mask_b.astype(jnp.float32)

        # Source attention term for all heads with one MXU call: [H, tk].
        al = lax.dot_general(attl_ref[...], xk, (((1,), (1,)), ((), ())),
                             preferred_element_type=jnp.float32)
        ar = ar_s[...]                          # [tq, H]
        m_old = m_s[...]                        # [tq, H]

        m_cols, lsum_cols, contribs = [], [], []
        for h in range(heads):                  # static, tiny -> unrolled
            sl = slice(h * out_ch, (h + 1) * out_ch)
            xq_h = xq[:, sl]                    # [tq, C] bf16
            xk_h = xk[:, sl]                    # [tk, C] bf16

            # logits[i, j] = xq_i . xk_j  (contract last dims, no transpose).
            logits = lax.dot_general(xq_h, xk_h, (((1,), (1,)), ((), ())),
                                     preferred_element_type=jnp.float32)
            # sigmoid via a single tanh (one EUP pass instead of exp + recip).
            sig = 0.5 * jnp.tanh(0.5 * logits) + 0.5
            alpha = (ar[:, h:h + 1] + al[h:h + 1, :]) * sig   # 'MX' attention
            alpha = _leaky_relu(alpha, att_slope)
            alpha = jnp.where(mask_b, alpha, jnp.float32(-1e30))

            m_old_h = m_old[:, h:h + 1]
            m_new_h = jnp.maximum(m_old_h,
                                  jnp.max(alpha, axis=-1, keepdims=True))
            # maskf multiply so fully-masked rows contribute exactly 0.
            p = jnp.exp(alpha - m_new_h) * maskf
            m_cols.append(m_new_h)
            lsum_cols.append(jnp.sum(p, axis=-1, keepdims=True))
            contribs.append(jnp.dot(p.astype(jnp.bfloat16), xk_h,
                                    preferred_element_type=jnp.float32))

        # One full-width scratch store per step (no per-head lane slices).
        m_new = jnp.concatenate(m_cols, axis=1)               # [tq, H]
        corr = jnp.exp(m_old - m_new)                         # [tq, H]
        l_s[...] = corr * l_s[...] + jnp.concatenate(lsum_cols, axis=1)
        corr_b = jnp.concatenate(
            [jnp.broadcast_to(corr[:, h:h + 1], (corr.shape[0], out_ch))
             for h in range(heads)], axis=1)                  # [tq, H*C]
        acc_s[...] = corr_b * acc_s[...] + jnp.concatenate(contribs, axis=1)
        m_s[...] = m_new

    @pl.when(kv == pl.num_programs(1) - 1)
    def _finalize():
        inv_l = pl.reciprocal(jnp.maximum(l_s[...], 1e-20), approx=True)
        inv_b = jnp.concatenate(
            [jnp.broadcast_to(inv_l[:, h:h + 1], (inv_l.shape[0], out_ch))
             for h in range(heads)], axis=1)                  # [tq, H*C]
        out = acc_s[...] * inv_b + bias_ref[...]
        o_ref[...] = _leaky_relu(out, out_slope).astype(o_ref.dtype)


def supergat_conv(xp, attl_bd, attr_bd, bias, adj, *, heads, out_ch,
                  tile_q=128, tile_kv=512, att_slope=0.2, out_slope=0.01):
    """xp: [N_pad, H*C] pre-projected node features (bf16)."""
    n, hc = xp.shape
    assert hc == heads * out_ch
    tq = tile_q                      # N is padded to a multiple of 128
    tk = _pick_tile(n, tile_kv)
    qt, kt = n // tq, n // tk

    # Per-(q,kv) block non-emptiness table (scalar-prefetched into SMEM).
    nblk = (adj.astype(jnp.int32).reshape(qt, tq, kt, tk)
            .sum(axis=(1, 3)) > 0).astype(jnp.int32)

    kernel = functools.partial(_supergat_kernel, heads=heads, out_ch=out_ch,
                               att_slope=att_slope, out_slope=out_slope)
    return pl.pallas_call(
        kernel,
        out_shape=jax.ShapeDtypeStruct((n, hc), jnp.bfloat16),
        grid_spec=pltpu.PrefetchScalarGridSpec(
            num_scalar_prefetch=1,
            grid=(qt, kt),
            in_specs=[
                pl.BlockSpec((tq, hc), lambda q, k, nb: (q, 0)),     # xq proj
                pl.BlockSpec((tk, hc), lambda q, k, nb: (k, 0)),     # xk proj
                pl.BlockSpec((heads, hc), lambda q, k, nb: (0, 0)),  # att_l bd
                pl.BlockSpec((heads, hc), lambda q, k, nb: (0, 0)),  # att_r bd
                pl.BlockSpec((1, hc), lambda q, k, nb: (0, 0)),      # conv bias
                pl.BlockSpec((tq, tk), lambda q, k, nb: (q, k)),     # int8 adj
            ],
            out_specs=pl.BlockSpec((tq, hc), lambda q, k, nb: (q, 0)),
            scratch_shapes=[
                pltpu.VMEM((tq, heads), jnp.float32),   # ar (target term)
                pltpu.VMEM((tq, heads), jnp.float32),   # running max
                pltpu.VMEM((tq, heads), jnp.float32),   # running sum
                pltpu.VMEM((tq, hc), jnp.float32),      # output accumulator
            ]),
        compiler_params=pltpu.CompilerParams(
            dimension_semantics=("parallel", "arbitrary")),
    )(nblk, xp, xp, attl_bd, attr_bd, bias, adj)


# ----------------------------------------------------------------------------
# Fused, row-tiled global_max_pool + fc2.
#   Running masked max is kept in a [G, F] VMEM scratch; fc2 matmul happens in
#   a pl.when finalize on the last row tile. Grid axis is "arbitrary".
# ----------------------------------------------------------------------------
def _pool_fc2_kernel(x_ref, gmask_ref, w_ref, b_ref, o_ref, run_s,
                     *, num_graphs):
    i = pl.program_id(0)

    @pl.when(i == 0)
    def _init():
        run_s[...] = jnp.full_like(run_s, -1e30)

    x = x_ref[...].astype(jnp.float32)                 # [tn, F]
    for g in range(num_graphs):                        # static & tiny
        m = gmask_ref[:, g:g + 1] > 0                  # [tn, 1]
        vals = jnp.where(m, x, jnp.float32(-1e30))
        run_s[g:g + 1, :] = jnp.maximum(
            run_s[g:g + 1, :], jnp.max(vals, axis=0, keepdims=True))

    @pl.when(i == pl.num_programs(0) - 1)
    def _finalize():
        pooled = run_s[...]                            # [G, F]
        o_ref[...] = (jnp.dot(pooled, w_ref[...],
                              preferred_element_type=jnp.float32)
                      + b_ref[...]).astype(o_ref.dtype)


def global_max_pool_fc2(x, gmask_t, w, b, num_graphs, block_rows=512):
    n, f = x.shape
    nout = w.shape[1]
    tn = _pick_tile(n, block_rows)
    return pl.pallas_call(
        functools.partial(_pool_fc2_kernel, num_graphs=num_graphs),
        out_shape=jax.ShapeDtypeStruct((num_graphs, nout), jnp.float32),
        grid=(n // tn,),
        in_specs=[
            pl.BlockSpec((tn, f), lambda i: (i, 0)),
            pl.BlockSpec((tn, num_graphs), lambda i: (i, 0)),
            pl.BlockSpec((f, nout), lambda i: (0, 0)),
            pl.BlockSpec((1, nout), lambda i: (0, 0)),
        ],
        out_specs=pl.BlockSpec((num_graphs, nout), lambda i: (0, 0)),
        scratch_shapes=[pltpu.VMEM((num_graphs, f), jnp.float32)],
        compiler_params=pltpu.CompilerParams(
            dimension_semantics=("arbitrary",)),
    )(x, gmask_t, w, b.reshape(1, nout))


# ----------------------------------------------------------------------------
# Parameter init (deterministic, synthetic) and full forward pass.
# Per-head attention/bias vectors are stored concatenated on lanes: [1, H*C].
# ----------------------------------------------------------------------------
def init_params(key, n_in, n_hid, n_heads, n_out):
    ks = jax.random.split(key, 10)
    s = 0.1
    return {
        "fc1_w": s * jax.random.normal(ks[0], (n_in, n_hid), jnp.float32),
        "fc1_b": s * jax.random.normal(ks[1], (n_hid,), jnp.float32),
        "conv1_w": s * jax.random.normal(ks[2], (n_hid, n_heads * n_hid), jnp.float32),
        "att1_l": s * jax.random.normal(ks[3], (1, n_heads * n_hid), jnp.float32),
        "att1_r": s * jax.random.normal(ks[4], (1, n_heads * n_hid), jnp.float32),
        "conv1_b": s * jax.random.normal(ks[5], (1, n_heads * n_hid), jnp.float32),
        "conv2_w": s * jax.random.normal(ks[6], (n_heads * n_hid, n_hid), jnp.float32),
        "att2_l": s * jax.random.normal(ks[7], (1, n_hid), jnp.float32),
        "att2_r": s * jax.random.normal(ks[8], (1, n_hid), jnp.float32),
        "conv2_b": jnp.zeros((1, n_hid), jnp.float32),
        "fc2_w": s * jax.random.normal(ks[9], (n_hid, n_out), jnp.float32),
        "fc2_b": jnp.zeros((n_out,), jnp.float32),
    }


def supergat_forward(p, x, edge_index, batch, num_graphs):
    n = x.shape[0]
    n_hid = p["fc1_w"].shape[1]
    n_heads = p["conv1_w"].shape[1] // n_hid

    # Pad the node count to a multiple of 128 so every kernel gets clean,
    # pipelined (8,128)-aligned tiles; padded rows are fully masked below.
    n_pad = ((n + 127) // 128) * 128
    x = jnp.pad(x, ((0, n_pad - n), (0, 0)))

    # int8 adjacency: adj[i, j] = 1 iff edge j -> i, plus self-loops for ALL
    # rows (incl. padding) so every softmax denominator stays > 0.
    adj = jnp.zeros((n_pad, n_pad), jnp.int8)
    adj = adj.at[edge_index[1], edge_index[0]].set(1)
    diag = jnp.arange(n_pad)
    adj = adj.at[diag, diag].set(1)

    # Graph membership [N_pad, G]; padded rows belong to no graph.
    batch_pad = jnp.concatenate(
        [batch, jnp.full((n_pad - n,), -1, batch.dtype)])
    gmask_t = (batch_pad[:, None] ==
               jnp.arange(num_graphs, dtype=batch.dtype)[None, :]).astype(jnp.int8)

    # Pre-cast streamed weights / attention vectors to bf16 once (host/XLA).
    bf = jnp.bfloat16
    fc1_w = p["fc1_w"].astype(bf)
    w1 = p["conv1_w"].astype(bf)
    w2 = p["conv2_w"].astype(bf)
    att1_l = _block_diag(p["att1_l"], n_heads, n_hid).astype(bf)
    att1_r = _block_diag(p["att1_r"], n_heads, n_hid).astype(bf)
    att2_l = _block_diag(p["att2_l"], 1, n_hid).astype(bf)
    att2_r = _block_diag(p["att2_r"], 1, n_hid).astype(bf)

    # fc1 + LeakyReLU(0.01); dropout is identity at inference.
    h = linear(x, fc1_w, p["fc1_b"], slope=0.01)                 # bf16

    # conv1 (heads=H, concat=True): projection once, then fused attention.
    xp1 = linear(h, w1)                                          # [N,H*C] bf16
    h = supergat_conv(xp1, att1_l, att1_r, p["conv1_b"], adj,
                      heads=n_heads, out_ch=n_hid)

    # conv2 (heads=1, concat=False; mean over one head == identity).
    xp2 = linear(h, w2)                                          # [N,C] bf16
    h = supergat_conv(xp2, att2_l, att2_r, p["conv2_b"], adj,
                      heads=1, out_ch=n_hid)

    # global_max_pool + fc2 (fused, row-tiled).
    return global_max_pool_fc2(h, gmask_t, p["fc2_w"], p["fc2_b"], num_graphs)


if __name__ == "__main__":
    N_IN, N_HID, N_HEADS, N_OUT = 16, 32, 2, 8
    NODES_PER_GRAPH, NUM_GRAPHS = 120, 2
    N = NODES_PER_GRAPH * NUM_GRAPHS   # 240 -> exercises padding to 256

    key = jax.random.PRNGKey(0)
    k_x, k_p = jax.random.split(key)

    # Node features.
    x = jax.random.normal(k_x, (N, N_IN), jnp.float32)

    # Undirected ring graph inside each of the two graphs in the batch.
    src, dst = [], []
    for g in range(NUM_GRAPHS):
        base = g * NODES_PER_GRAPH
        for i in range(NODES_PER_GRAPH):
            a = base + i
            b = base + (i + 1) % NODES_PER_GRAPH
            src += [a, b]
            dst += [b, a]
    edge_index = jnp.array([src, dst], dtype=jnp.int32)           # [2, 480]
    batch = jnp.array(
        [g for g in range(NUM_GRAPHS) for _ in range(NODES_PER_GRAPH)],
        dtype=jnp.int32)

    params = init_params(k_p, N_IN, N_HID, N_HEADS, N_OUT)

    out = supergat_forward(params, x, edge_index, batch, NUM_GRAPHS)
    out = jax.block_until_ready(out)
    assert out.shape == (NUM_GRAPHS, N_OUT), out.shape
    assert bool(jnp.all(jnp.isfinite(out)))
    print("KERNEL_OK")
</pallas_src>

<mosaic_0001>
module attributes {stable_mosaic.version = 11 : i64} {
  func.func @_linear_kernel(%arg0: i32, %arg1: memref<256x16xf32, #tpu.memory_space<vmem>>, %arg2: memref<16x32xbf16, #tpu.memory_space<vmem>>, %arg3: memref<1x32xf32, #tpu.memory_space<vmem>>, %arg4: memref<256x32xbf16, #tpu.memory_space<vmem>>) attributes {dimension_semantics = [#tpu.dimension_semantics<parallel>], iteration_bounds = array<i64: 1>, scalar_prefetch = 0 : i64, scratch_operands = 0 : i64, tpu.core_type = #tpu.core_type<tc>, window_params = [{transform_indices = @transform_0, window_bounds = array<i64: 256, 16>}, {pipeline_mode = #tpu.pipeline_mode<synchronous>, transform_indices = @transform_1, window_bounds = array<i64: 16, 32>}, {pipeline_mode = #tpu.pipeline_mode<synchronous>, transform_indices = @transform_2, window_bounds = array<i64: 1, 32>}, {transform_indices = @transform_3, window_bounds = array<i64: 256, 32>}]} {
    %c0 = arith.constant 0 : index
    %c0_0 = arith.constant 0 : index
    %0 = vector.load %arg1[%c0, %c0_0] : memref<256x16xf32, #tpu.memory_space<vmem>>, vector<256x16xf32>
    %1 = arith.truncf %0 : vector<256x16xf32> to vector<256x16xbf16>
    %c0_1 = arith.constant 0 : index
    %c0_2 = arith.constant 0 : index
    %2 = vector.load %arg2[%c0_1, %c0_2] : memref<16x32xbf16, #tpu.memory_space<vmem>>, vector<16x32xbf16>
    %cst = arith.constant dense<0.000000e+00> : vector<256x32xf32>
    %3 = tpu.matmul %1, %2, %cst {dimension_numbers = #tpu.dot_dimension_numbers<[1], [0], [0], [1], [0, 0, 1, 1], [], []>} : vector<256x16xbf16>, vector<16x32xbf16>, vector<256x32xf32> -> vector<256x32xf32>
    %c0_3 = arith.constant 0 : index
    %c0_4 = arith.constant 0 : index
    %4 = vector.load %arg3[%c0_3, %c0_4] : memref<1x32xf32, #tpu.memory_space<vmem>>, vector<1x32xf32>
    %5 = vector.broadcast %4 : vector<1x32xf32> to vector<256x32xf32>
    %6 = arith.addf %3, %5 : vector<256x32xf32>
    %cst_5 = arith.constant 0.000000e+00 : f32
    %7 = vector.broadcast %cst_5 : f32 to vector<256x32xf32>
    %8 = arith.cmpf oge, %6, %7 : vector<256x32xf32>
    %cst_6 = arith.constant 0.00999999977 : f32
    %9 = vector.broadcast %cst_6 : f32 to vector<256x32xf32>
    %10 = arith.mulf %9, %6 : vector<256x32xf32>
    %11 = arith.select %8, %6, %10 : vector<256x32xi1>, vector<256x32xf32>
    %12 = arith.truncf %11 : vector<256x32xf32> to vector<256x32xbf16>
    %c0_7 = arith.constant 0 : index
    %c0_8 = arith.constant 0 : index
    %13 = vector.load %arg4[%c0_7, %c0_8] : memref<256x32xbf16, #tpu.memory_space<vmem>>, vector<256x32xbf16>
    tpu.vector_store %arg4[%c0_7, %c0_8], %12 {strides = array<i32>} : memref<256x32xbf16, #tpu.memory_space<vmem>>, vector<256x32xbf16>,
    return
  }
  func.func @transform_0(%arg0: i32) -> (i32, i32) {
    %c0_i32 = arith.constant 0 : i32
    %c0_i32_0 = arith.constant 0 : i32
    return %arg0, %c0_i32 : i32, i32
  }
  func.func @transform_1(%arg0: i32) -> (i32, i32) {
    %c0_i32 = arith.constant 0 : i32
    %c0_i32_0 = arith.constant 0 : i32
    %c0_i32_1 = arith.constant 0 : i32
    return %c0_i32, %c0_i32_0 : i32, i32
  }
  func.func @transform_2(%arg0: i32) -> (i32, i32) {
    %c0_i32 = arith.constant 0 : i32
    %c0_i32_0 = arith.constant 0 : i32
    %c0_i32_1 = arith.constant 0 : i32
    return %c0_i32, %c0_i32_0 : i32, i32
  }
  func.func @transform_3(%arg0: i32) -> (i32, i32) {
    %c0_i32 = arith.constant 0 : i32
    %c0_i32_0 = arith.constant 0 : i32
    return %arg0, %c0_i32 : i32, i32
  }
}

</mosaic_0001>

<llo_original>
// kernel: tpu_custom_call.1
$region0: #{tpu_custom_call.1}
  #allocation0 [shape = 'u32[]', space=smem, size = 0x4, offset = 0x4, fixed_abs, tag = 'smem constant byte address 0x4 - core index']
  #allocation1 [shape = 'u32[72,128]{1,0:T(1,128)}', space=vmem, size = 0x9000, scoped, tag = 'internal scratch']
  %s0 = inlined_call_operand.vmem [shape: f32[256,16], index: 0, kind: input, shape index: {}]
  %s1 = inlined_call_operand.vmem [shape: bf16[16,32], index: 1, kind: input, shape index: {}]
  %s2 = inlined_call_operand.vmem [shape: f32[1,32], index: 2, kind: input, shape index: {}]
  %s3 = inlined_call_operand.vmem [shape: bf16[256,32], index: 3, kind: output, shape index: {}]
  %s4 = sld [smem:[#allocation0]]
  $region22: #{tpu_custom_call.1} parent=0
    _
  %s6 = ssub.s32 1, %s4
  %s7 = scalar_select 0, %s6, %s4
  // Predicated region
  $region2: #{tpu_custom_call.1} parent=0 // pred_check
    _
  $region3: #{tpu_custom_call.1} parent=0 // pred_check_branch
    %9 = sbr.rel (0) target = $region5
  $region4: #{tpu_custom_call.1} parent=0 // pred_region
    _
  $region5: #{tpu_custom_call.1} parent=0 // pred_fallthru
    _
  // Predicated region
  $region6: #{tpu_custom_call.1} parent=0 // pred_check
    _
  $region7: #{tpu_custom_call.1} parent=0 // pred_check_branch
    %11 = sbr.rel (0) target = $region9
  $region8: #{tpu_custom_call.1} parent=0 // pred_region
    _
  $region9: #{tpu_custom_call.1} parent=0 // pred_fallthru
    _
  // Predicated region
  $region10: #{tpu_custom_call.1} parent=0 // pred_check
    _
  $region11: #{tpu_custom_call.1} parent=0 // pred_check_branch
    %13 = sbr.rel (0) target = $region13
  $region12: #{tpu_custom_call.1} parent=0 // pred_region
    _
  $region13: #{tpu_custom_call.1} parent=0 // pred_fallthru
    _
  %v15 = vld [vmem:[%s0] sm:$0xff]
  %v16 = vld [vmem:[%s0 + $0x8] sm:$0xff]
  %v17 = vld [vmem:[%s0 + $0x10] sm:$0xff]
  %v18 = vld [vmem:[%s0 + $0x18] sm:$0xff]
  %v19 = vld [vmem:[%s0 + $0x20] sm:$0xff]
  %v20 = vld [vmem:[%s0 + $0x28] sm:$0xff]
  %v21 = vld [vmem:[%s0 + $0x30] sm:$0xff]
  %v22 = vld [vmem:[%s0 + $0x38] sm:$0xff]
  %v23 = vld [vmem:[%s0 + $0x40] sm:$0xff]
  %v24 = vld [vmem:[%s0 + $0x48] sm:$0xff]
  %v25 = vld [vmem:[%s0 + $0x50] sm:$0xff]
  %v26 = vld [vmem:[%s0 + $0x58] sm:$0xff]
  %v27 = vld [vmem:[%s0 + $0x60] sm:$0xff]
  %v28 = vld [vmem:[%s0 + $0x68] sm:$0xff]
  %v29 = vld [vmem:[%s0 + $0x70] sm:$0xff]
  %v30 = vld [vmem:[%s0 + $0x78] sm:$0xff]
  %v31 = vld [vmem:[%s0 + $0x80] sm:$0xff]
  %v32 = vld [vmem:[%s0 + $0x88] sm:$0xff]
  %v33 = vld [vmem:[%s0 + $0x90] sm:$0xff]
  %v34 = vld [vmem:[%s0 + $0x98] sm:$0xff]
  %v35 = vld [vmem:[%s0 + $0xa0] sm:$0xff]
  %v36 = vld [vmem:[%s0 + $0xa8] sm:$0xff]
  %v37 = vld [vmem:[%s0 + $0xb0] sm:$0xff]
  %v38 = vld [vmem:[%s0 + $0xb8] sm:$0xff]
  %v39 = vld [vmem:[%s0 + $0xc0] sm:$0xff]
  %v40 = vld [vmem:[%s0 + $0xc8] sm:$0xff]
  %v41 = vld [vmem:[%s0 + $0xd0] sm:$0xff]
  %v42 = vld [vmem:[%s0 + $0xd8] sm:$0xff]
  %v43 = vld [vmem:[%s0 + $0xe0] sm:$0xff]
  %v44 = vld [vmem:[%s0 + $0xe8] sm:$0xff]
  %v45 = vld [vmem:[%s0 + $0xf0] sm:$0xff]
  %v46 = vld [vmem:[%s0 + $0xf8] sm:$0xff]
  %v47 = vpack.c.bf16 %v16, %v15
  %v48 = vpack.c.bf16 %v18, %v17
  %v49 = vpack.c.bf16 %v20, %v19
  %v50 = vpack.c.bf16 %v22, %v21
  %v51 = vpack.c.bf16 %v24, %v23
  %v52 = vpack.c.bf16 %v26, %v25
  %v53 = vpack.c.bf16 %v28, %v27
  %v54 = vpack.c.bf16 %v30, %v29
  %v55 = vpack.c.bf16 %v32, %v31
  %v56 = vpack.c.bf16 %v34, %v33
  %v57 = vpack.c.bf16 %v36, %v35
  %v58 = vpack.c.bf16 %v38, %v37
  %v59 = vpack.c.bf16 %v40, %v39
  %v60 = vpack.c.bf16 %v42, %v41
  %v61 = vpack.c.bf16 %v44, %v43
  %v62 = vpack.c.bf16 %v46, %v45
  %v63 = vld [vmem:[%s1] sm:$0xf]
  %v64 = vld [vmem:[%s1 + $0x4] sm:$0xf]
  %v65 = vld [vmem:[%s2] sm:$0x1]
  %v67 = vperm.slane %v65, 0
  %v71 = vunpack.c.l.b16 %v63
  %v72 = vunpack.c.l.b16 %v64
  %v73 = vpack.c.b16 %v72, %v71
  %vm75 = vcmask 130048
  %v77 = vsel %vm75, %v47, 0
  %v80 = vsel %vm75, %v48, 0
  %v83 = vsel %vm75, %v49, 0
  %v86 = vsel %vm75, %v50, 0
  %v89 = vsel %vm75, %v51, 0
  %v92 = vsel %vm75, %v52, 0
  %v95 = vsel %vm75, %v53, 0
  %v98 = vsel %vm75, %v54, 0
  %v101 = vsel %vm75, %v55, 0
  %v104 = vsel %vm75, %v56, 0
  %v107 = vsel %vm75, %v57, 0
  %v110 = vsel %vm75, %v58, 0
  %v113 = vsel %vm75, %v59, 0
  %v116 = vsel %vm75, %v60, 0
  %v119 = vsel %vm75, %v61, 0
  %v122 = vsel %vm75, %v62, 0
  %124 = vmatpush.bf16.msra.mxu0 0
  %125 = vmatpush.bf16.msra.mxu0 0
  %126 = vmatpush.bf16.msra.mxu0 0
  %127 = vmatpush.bf16.msra.mxu0 0
  %128 = vmatpush.bf16.msra.mxu0 0
  %129 = vmatpush.bf16.msra.mxu0 0
  %130 = vmatpush.bf16.msra.mxu0 0
  %131 = vmatpush.bf16.msra.mxu0 %v73
  %132 = vmatmul.bf16.gmra.mxu0 %v77
  %v133 = vpop.f32.mrf.mxu0
  %v134 = vadd.f32 %v67, %v133
  %v135 = vpop.f32.mrf.mxu0
  %v136 = vadd.f32 %v67, %v135
  %137 = vmatmul.bf16.gmra.mxu0 %v80
  %v138 = vpop.f32.mrf.mxu0
  %v139 = vadd.f32 %v67, %v138
  %v140 = vpop.f32.mrf.mxu0
  %v141 = vadd.f32 %v67, %v140
  %142 = vmatmul.bf16.gmra.mxu0 %v83
  %v143 = vpop.f32.mrf.mxu0
  %v144 = vadd.f32 %v67, %v143
  %v145 = vpop.f32.mrf.mxu0
  %v146 = vadd.f32 %v67, %v145
  %147 = vmatmul.bf16.gmra.mxu0 %v86
  %v148 = vpop.f32.mrf.mxu0
  %v149 = vadd.f32 %v67, %v148
  %v150 = vpop.f32.mrf.mxu0
  %v151 = vadd.f32 %v67, %v150
  %152 = vmatmul.bf16.gmra.mxu0 %v89
  %v153 = vpop.f32.mrf.mxu0
  %v154 = vadd.f32 %v67, %v153
  %v155 = vpop.f32.mrf.mxu0
  %v156 = vadd.f32 %v67, %v155
  %157 = vmatmul.bf16.gmra.mxu0 %v92
  %v158 = vpop.f32.mrf.mxu0
  %v159 = vadd.f32 %v67, %v158
  %v160 = vpop.f32.mrf.mxu0
  %v161 = vadd.f32 %v67, %v160
  %162 = vmatmul.bf16.gmra.mxu0 %v95
  %v163 = vpop.f32.mrf.mxu0
  %v164 = vadd.f32 %v67, %v163
  %v165 = vpop.f32.mrf.mxu0
  %v166 = vadd.f32 %v67, %v165
  %167 = vmatmul.bf16.gmra.mxu0 %v98
  %v168 = vpop.f32.mrf.mxu0
  %v169 = vadd.f32 %v67, %v168
  %v170 = vpop.f32.mrf.mxu0
  %v171 = vadd.f32 %v67, %v170
  %172 = vmatmul.bf16.gmra.mxu0 %v101
  %v173 = vpop.f32.mrf.mxu0
  %v174 = vadd.f32 %v67, %v173
  %v175 = vpop.f32.mrf.mxu0
  %v176 = vadd.f32 %v67, %v175
  %177 = vmatmul.bf16.gmra.mxu0 %v104
  %v178 = vpop.f32.mrf.mxu0
  %v179 = vadd.f32 %v67, %v178
  %v180 = vpop.f32.mrf.mxu0
  %v181 = vadd.f32 %v67, %v180
  %182 = vmatmul.bf16.gmra.mxu0 %v107
  %v183 = vpop.f32.mrf.mxu0
  %v184 = vadd.f32 %v67, %v183
  %v185 = vpop.f32.mrf.mxu0
  %v186 = vadd.f32 %v67, %v185
  %187 = vmatmul.bf16.gmra.mxu0 %v110
  %v188 = vpop.f32.mrf.mxu0
  %v189 = vadd.f32 %v67, %v188
  %v190 = vpop.f32.mrf.mxu0
  %v191 = vadd.f32 %v67, %v190
  %192 = vmatmul.bf16.gmra.mxu0 %v113
  %v193 = vpop.f32.mrf.mxu0
  %v194 = vadd.f32 %v67, %v193
  %v195 = vpop.f32.mrf.mxu0
  %v196 = vadd.f32 %v67, %v195
  %197 = vmatmul.bf16.gmra.mxu0 %v116
  %v198 = vpop.f32.mrf.mxu0
  %v199 = vadd.f32 %v67, %v198
  %v200 = vpop.f32.mrf.mxu0
  %v201 = vadd.f32 %v67, %v200
  %202 = vmatmul.bf16.gmra.mxu0 %v119
  %v203 = vpop.f32.mrf.mxu0
  %v204 = vadd.f32 %v67, %v203
  %v205 = vpop.f32.mrf.mxu0
  %v206 = vadd.f32 %v67, %v205
  %207 = vmatmul.bf16.gmra.mxu0 %v122
  %v208 = vpop.f32.mrf.mxu0
  %v209 = vadd.f32 %v67, %v208
  %v210 = vpop.f32.mrf.mxu0
  %v211 = vadd.f32 %v67, %v210
  %212 = vdwg.mxu0
  %vm213 = vcmp.ge.f32.partialorder %v134, 0.0
  %vm214 = vcmp.ge.f32.partialorder %v136, 0.0
  %vm215 = vcmp.ge.f32.partialorder %v139, 0.0
  %vm216 = vcmp.ge.f32.partialorder %v141, 0.0
  %vm217 = vcmp.ge.f32.partialorder %v144, 0.0
  %vm218 = vcmp.ge.f32.partialorder %v146, 0.0
  %vm219 = vcmp.ge.f32.partialorder %v149, 0.0
  %vm220 = vcmp.ge.f32.partialorder %v151, 0.0
  %vm221 = vcmp.ge.f32.partialorder %v154, 0.0
  %vm222 = vcmp.ge.f32.partialorder %v156, 0.0
  %vm223 = vcmp.ge.f32.partialorder %v159, 0.0
  %vm224 = vcmp.ge.f32.partialorder %v161, 0.0
  %vm225 = vcmp.ge.f32.partialorder %v164, 0.0
  %vm226 = vcmp.ge.f32.partialorder %v166, 0.0
  %vm227 = vcmp.ge.f32.partialorder %v169, 0.0
  %vm228 = vcmp.ge.f32.partialorder %v171, 0.0
  %vm229 = vcmp.ge.f32.partialorder %v174, 0.0
  %vm230 = vcmp.ge.f32.partialorder %v176, 0.0
  %vm231 = vcmp.ge.f32.partialorder %v179, 0.0
  %vm232 = vcmp.ge.f32.partialorder %v181, 0.0
  %vm233 = vcmp.ge.f32.partialorder %v184, 0.0
  %vm234 = vcmp.ge.f32.partialorder %v186, 0.0
  %vm235 = vcmp.ge.f32.partialorder %v189, 0.0
  %vm236 = vcmp.ge.f32.partialorder %v191, 0.0
  %vm237 = vcmp.ge.f32.partialorder %v194, 0.0
  %vm238 = vcmp.ge.f32.partialorder %v196, 0.0
  %vm239 = vcmp.ge.f32.partialorder %v199, 0.0
  %vm240 = vcmp.ge.f32.partialorder %v201, 0.0
  %vm241 = vcmp.ge.f32.partialorder %v204, 0.0
  %vm242 = vcmp.ge.f32.partialorder %v206, 0.0
  %vm243 = vcmp.ge.f32.partialorder %v209, 0.0
  %vm244 = vcmp.ge.f32.partialorder %v211, 0.0
  %v245 = vmul.f32 %v134, 0.01
  %v246 = vmul.f32 %v136, 0.01
  %v247 = vmul.f32 %v139, 0.01
  %v248 = vmul.f32 %v141, 0.01
  %v249 = vmul.f32 %v144, 0.01
  %v250 = vmul.f32 %v146, 0.01
  %v251 = vmul.f32 %v149, 0.01
  %v252 = vmul.f32 %v151, 0.01
  %v253 = vmul.f32 %v154, 0.01
  %v254 = vmul.f32 %v156, 0.01
  %v255 = vmul.f32 %v159, 0.01
  %v256 = vmul.f32 %v161, 0.01
  %v257 = vmul.f32 %v164, 0.01
  %v258 = vmul.f32 %v166, 0.01
  %v259 = vmul.f32 %v169, 0.01
  %v260 = vmul.f32 %v171, 0.01
  %v261 = vmul.f32 %v174, 0.01
  %v262 = vmul.f32 %v176, 0.01
  %v263 = vmul.f32 %v179, 0.01
  %v264 = vmul.f32 %v181, 0.01
  %v265 = vmul.f32 %v184, 0.01
  %v266 = vmul.f32 %v186, 0.01
  %v267 = vmul.f32 %v189, 0.01
  %v268 = vmul.f32 %v191, 0.01
  %v269 = vmul.f32 %v194, 0.01
  %v270 = vmul.f32 %v196, 0.01
  %v271 = vmul.f32 %v199, 0.01
  %v272 = vmul.f32 %v201, 0.01
  %v273 = vmul.f32 %v204, 0.01
  %v274 = vmul.f32 %v206, 0.01
  %v275 = vmul.f32 %v209, 0.01
  %v276 = vmul.f32 %v211, 0.01
  %v277 = vsel %vm213, %v134, %v245
  %v278 = vsel %vm214, %v136, %v246
  %v279 = vsel %vm215, %v139, %v247
  %v280 = vsel %vm216, %v141, %v248
  %v281 = vsel %vm217, %v144, %v249
  %v282 = vsel %vm218, %v146, %v250
  %v283 = vsel %vm219, %v149, %v251
  %v284 = vsel %vm220, %v151, %v252
  %v285 = vsel %vm221, %v154, %v253
  %v286 = vsel %vm222, %v156, %v254
  %v287 = vsel %vm223, %v159, %v255
  %v288 = vsel %vm224, %v161, %v256
  %v289 = vsel %vm225, %v164, %v257
  %v290 = vsel %vm226, %v166, %v258
  %v291 = vsel %vm227, %v169, %v259
  %v292 = vsel %vm228, %v171, %v260
  %v293 = vsel %vm229, %v174, %v261
  %v294 = vsel %vm230, %v176, %v262
  %v295 = vsel %vm231, %v179, %v263
  %v296 = vsel %vm232, %v181, %v264
  %v297 = vsel %vm233, %v184, %v265
  %v298 = vsel %vm234, %v186, %v266
  %v299 = vsel %vm235, %v189, %v267
  %v300 = vsel %vm236, %v191, %v268
  %v301 = vsel %vm237, %v194, %v269
  %v302 = vsel %vm238, %v196, %v270
  %v303 = vsel %vm239, %v199, %v271
  %v304 = vsel %vm240, %v201, %v272
  %v305 = vsel %vm241, %v204, %v273
  %v306 = vsel %vm242, %v206, %v274
  %v307 = vsel %vm243, %v209, %v275
  %v308 = vsel %vm244, %v211, %v276
  %v309 = vpack.c.bf16 %v277, %v277
  %v310 = vpack.c.bf16 %v278, %v278
  %v311 = vpack.c.bf16 %v279, %v279
  %v312 = vpack.c.bf16 %v280, %v280
  %v313 = vpack.c.bf16 %v281, %v281
  %v314 = vpack.c.bf16 %v282, %v282
  %v315 = vpack.c.bf16 %v283, %v283
  %v316 = vpack.c.bf16 %v284, %v284
  %v317 = vpack.c.bf16 %v285, %v285
  %v318 = vpack.c.bf16 %v286, %v286
  %v319 = vpack.c.bf16 %v287, %v287
  %v320 = vpack.c.bf16 %v288, %v288
  %v321 = vpack.c.bf16 %v289, %v289
  %v322 = vpack.c.bf16 %v290, %v290
  %v323 = vpack.c.bf16 %v291, %v291
  %v324 = vpack.c.bf16 %v292, %v292
  %v325 = vpack.c.bf16 %v293, %v293
  %v326 = vpack.c.bf16 %v294, %v294
  %v327 = vpack.c.bf16 %v295, %v295
  %v328 = vpack.c.bf16 %v296, %v296
  %v329 = vpack.c.bf16 %v297, %v297
  %v330 = vpack.c.bf16 %v298, %v298
  %v331 = vpack.c.bf16 %v299, %v299
  %v332 = vpack.c.bf16 %v300, %v300
  %v333 = vpack.c.bf16 %v301, %v301
  %v334 = vpack.c.bf16 %v302, %v302
  %v335 = vpack.c.bf16 %v303, %v303
  %v336 = vpack.c.bf16 %v304, %v304
  %v337 = vpack.c.bf16 %v305, %v305
  %v338 = vpack.c.bf16 %v306, %v306
  %v339 = vpack.c.bf16 %v307, %v307
  %v340 = vpack.c.bf16 %v308, %v308
  %vm341 = vcmask 257024
  %342 = vst.msk [vmem:[%s3] sm:$0xf] %vm341, %v309
  %343 = vst.msk [vmem:[%s3 + $0x4] sm:$0xf] %vm341, %v310
  %344 = vst.msk [vmem:[%s3 + $0x8] sm:$0xf] %vm341, %v311
  %345 = vst.msk [vmem:[%s3 + $0xc] sm:$0xf] %vm341, %v312
  %346 = vst.msk [vmem:[%s3 + $0x10] sm:$0xf] %vm341, %v313
  %347 = vst.msk [vmem:[%s3 + $0x14] sm:$0xf] %vm341, %v314
  %348 = vst.msk [vmem:[%s3 + $0x18] sm:$0xf] %vm341, %v315
  %349 = vst.msk [vmem:[%s3 + $0x1c] sm:$0xf] %vm341, %v316
  %350 = vst.msk [vmem:[%s3 + $0x20] sm:$0xf] %vm341, %v317
  %351 = vst.msk [vmem:[%s3 + $0x24] sm:$0xf] %vm341, %v318
  %352 = vst.msk [vmem:[%s3 + $0x28] sm:$0xf] %vm341, %v319
  %353 = vst.msk [vmem:[%s3 + $0x2c] sm:$0xf] %vm341, %v320
  %354 = vst.msk [vmem:[%s3 + $0x30] sm:$0xf] %vm341, %v321
  %355 = vst.msk [vmem:[%s3 + $0x34] sm:$0xf] %vm341, %v322
  %356 = vst.msk [vmem:[%s3 + $0x38] sm:$0xf] %vm341, %v323
  %357 = vst.msk [vmem:[%s3 + $0x3c] sm:$0xf] %vm341, %v324
  %358 = vst.msk [vmem:[%s3 + $0x40] sm:$0xf] %vm341, %v325
  %359 = vst.msk [vmem:[%s3 + $0x44] sm:$0xf] %vm341, %v326
  %360 = vst.msk [vmem:[%s3 + $0x48] sm:$0xf] %vm341, %v327
  %361 = vst.msk [vmem:[%s3 + $0x4c] sm:$0xf] %vm341, %v328
  %362 = vst.msk [vmem:[%s3 + $0x50] sm:$0xf] %vm341, %v329
  %363 = vst.msk [vmem:[%s3 + $0x54] sm:$0xf] %vm341, %v330
  %364 = vst.msk [vmem:[%s3 + $0x58] sm:$0xf] %vm341, %v331
  %365 = vst.msk [vmem:[%s3 + $0x5c] sm:$0xf] %vm341, %v332
  %366 = vst.msk [vmem:[%s3 + $0x60] sm:$0xf] %vm341, %v333
  %367 = vst.msk [vmem:[%s3 + $0x64] sm:$0xf] %vm341, %v334
  %368 = vst.msk [vmem:[%s3 + $0x68] sm:$0xf] %vm341, %v335
  %369 = vst.msk [vmem:[%s3 + $0x6c] sm:$0xf] %vm341, %v336
  %370 = vst.msk [vmem:[%s3 + $0x70] sm:$0xf] %vm341, %v337
  %371 = vst.msk [vmem:[%s3 + $0x74] sm:$0xf] %vm341, %v338
  %372 = vst.msk [vmem:[%s3 + $0x78] sm:$0xf] %vm341, %v339
  %373 = vst.msk [vmem:[%s3 + $0x7c] sm:$0xf] %vm341, %v340
  // Predicated region
  $region14: #{tpu_custom_call.1} parent=0 // pred_check
    _
  $region15: #{tpu_custom_call.1} parent=0 // pred_check_branch
    %375 = sbr.rel (0) target = $region17
  $region16: #{tpu_custom_call.1} parent=0 // pred_region
    _
  $region17: #{tpu_custom_call.1} parent=0 // pred_fallthru
    _
  // Predicated region
  $region18: #{tpu_custom_call.1} parent=0 // pred_check
    _
  $region19: #{tpu_custom_call.1} parent=0 // pred_check_branch
    %377 = sbr.rel (0) target = $region21
  $region20: #{tpu_custom_call.1} parent=0 // pred_region
    _
  $region21: #{tpu_custom_call.1} parent=0 // pred_fallthru
    _

</llo_original>
